<compile_context>
chip_gen: v6e
topology: v6e:2x2x1
jax: 0.10.0
libtpu: 0.0.40
codegen_flags: <defaults>
</compile_context>

<pallas_src>
import functools

import jax
import jax.numpy as jnp
import numpy as np
from jax.experimental import pallas as pl
from jax.experimental.pallas import tpu as pltpu

NEG_SLOPE = 0.01   # nn.LeakyReLU default
BN_EPS = 1e-5      # nn.BatchNorm2d default


# --------------------------- roll direction probe ---------------------------

_ROLL_PROBE_CACHE = []


def _roll_moves_elements_up():
    """Empirically determine pltpu.roll's direction (run once, tiny kernel)."""
    if _ROLL_PROBE_CACHE:
        return _ROLL_PROBE_CACHE[0]

    def kernel(x_ref, o_ref):
        o_ref[...] = pltpu.roll(x_ref[...], shift=3, axis=1)

    x = jnp.tile(jax.lax.iota(jnp.float32, 128)[None, :], (8, 1))
    out = np.asarray(
        pl.pallas_call(
            kernel,
            out_shape=jax.ShapeDtypeStruct((8, 128), jnp.float32),
            grid=(1,),
            in_specs=[pl.BlockSpec((8, 128), lambda i: (0, 0))],
            out_specs=pl.BlockSpec((8, 128), lambda i: (0, 0)),
        )(x)
    )
    if out[0, 3] == 0.0 and out[0, 0] == 125.0:
        res = True        # jnp.roll-like: element i -> i + shift
    elif out[0, 0] == 3.0 and out[0, 125] == 0.0:
        res = False       # opposite direction
    else:
        raise RuntimeError("unexpected pltpu.roll semantics")
    _ROLL_PROBE_CACHE.append(res)
    return res


# ------------------------------ fused kernel --------------------------------

def _fused_up_kernel(xsrc_ref, masks_ref, aup_ref, bup_ref,
                     w1_ref, g1_ref, b1_ref,
                     w2_ref, g2_ref, b2_ref,
                     wsc_ref, bsc_ref, out_ref, *, W, M, roll_np_like):
    f32 = jnp.float32

    def shift_flat(v, s):
        """y[:, p] = v[:, (p + s) mod M]; borders handled by masks."""
        if s % M == 0:
            return v
        amt = (-s) % M if roll_np_like else (s % M)
        return pltpu.roll(v, shift=amt, axis=1)

    def leaky(v):
        return jnp.where(v > 0, v, f32(NEG_SLOPE) * v)

    def conv3x3(x, w_ref):
        """Sum of 9 shifted (Co, Cx) @ (Cx, M) MXU matmuls (in-VMEM im2col)."""
        acc = None
        for kh in range(3):
            for kw in range(3):
                dh, dw = kh - 1, kw - 1
                xt = shift_flat(x, dh * W + dw)
                if dh != 0:
                    xt = xt * masks_ref[3 + kh:4 + kh, :]   # h-border validity
                if dw != 0:
                    xt = xt * masks_ref[6 + kw:7 + kw, :]   # w-border validity
                c = jnp.dot(w_ref[kh * 3 + kw], xt, preferred_element_type=f32)
                acc = c if acc is None else acc + c
        return acc

    def batchnorm(v, g_ref, b_ref):
        """Training-mode BatchNorm2d: biased batch stats over all N*H*W."""
        mean = jnp.mean(v, axis=1, keepdims=True)
        var = jnp.mean(v * v, axis=1, keepdims=True) - mean * mean
        scale = g_ref[...] * jax.lax.rsqrt(var + f32(BN_EPS))
        return (v - mean) * scale + b_ref[...]

    xsrc = xsrc_ref[...]                    # (Cmid, M), lane-dense
    m_x2 = masks_ref[0:1, :]                # x2 region of the H-concat
    m_up = masks_ref[1:2, :]                # valid (non-pad) upsample region
    m_odd = masks_ref[2:3, :]               # conv-transpose tap parity

    # ConvTranspose2d(k=(2,1), s=(2,1)): both taps in one pass, interleaved by
    # the parity mask; F.pad + torch.cat(dim=H) are realised by m_x2 / m_up.
    y0 = jnp.dot(aup_ref[0], xsrc, preferred_element_type=f32)
    y1 = jnp.dot(aup_ref[1], xsrc, preferred_element_type=f32)
    yup = y0 + m_odd * (y1 - y0) + bup_ref[...]
    xcat = m_x2 * xsrc + m_up * yup         # DoubleConv input, (Cmid, M)

    # 1x1 shortcut conv (with bias)
    res = jnp.dot(wsc_ref[...], xcat, preferred_element_type=f32) + bsc_ref[...]

    # DoubleConv: (conv3x3 -> LeakyReLU -> BN) twice, then residual + LeakyReLU
    h = batchnorm(leaky(conv3x3(xcat, w1_ref)), g1_ref, b1_ref)
    h = batchnorm(leaky(conv3x3(h, w2_ref)), g2_ref, b2_ref)
    out_ref[...] = leaky(h + res)


# ------------------------------ host wrapper --------------------------------

def up_forward(x1_nchw, x2_nchw, p, *, roll_np_like=True):
    """Up(in_channels, mid_channels, out_channels).forward(x1, x2), NCHW."""
    x1 = x1_nchw.astype(jnp.float32)
    x2 = x2_nchw.astype(jnp.float32)
    N, Cin, H1, W1 = x1.shape
    N2, Cin2, H2, W2 = x2.shape
    assert N == N2 and Cin == Cin2, "torch.cat(dim=2) needs matching N and C"

    Cmid = p["conv1_w"].shape[1]
    Cout = p["conv1_w"].shape[0]
    assert Cmid == Cin, "ResidualBlock(mid_channels) must equal channel count"

    # Static spatial bookkeeping: upsample H by 2, F.pad to x2's size, cat on H.
    Hup = 2 * H1
    diffY, diffX = H2 - Hup, W2 - W1
    # TODO(synk): negative diffY/diffX (torch F.pad cropping) is not handled.
    padT, padB = diffY // 2, diffY - diffY // 2
    padL, padR = diffX // 2, diffX - diffX // 2
    H = H2 + Hup + diffY            # concatenated height
    W = W2
    M = N * H * W

    # ---- layout plumbing only (reshape/transpose/repeat, no compute) ----
    # xsrc holds x2 rows verbatim plus the *raw* x1 values row-duplicated into
    # their upsampled positions; the conv-transpose matmul/bias is applied
    # in-kernel and restricted to the valid region via masks.
    x1rep = jnp.repeat(x1, 2, axis=2)                                  # (N,C,2H1,W1)
    x1rep = jnp.pad(x1rep, ((0, 0), (0, 0), (padT, padB), (padL, padR)))
    xcat_src = jnp.concatenate([x2, x1rep], axis=2)                    # (N,C,H,W)
    xsrc = jnp.transpose(xcat_src, (1, 0, 2, 3)).reshape(Cin, M)       # lane-dense

    # ---- compile-time masks (trace-time numpy constants), (9, M) ----
    pos = np.arange(M)
    w_idx = pos % W
    h_idx = (pos // W) % H
    hh = h_idx - (H2 + padT)        # row inside the un-padded upsampled block
    m_x2 = h_idx < H2
    m_up = (hh >= 0) & (hh < Hup) & (w_idx >= padL) & (w_idx < padL + W1)
    m_odd = (np.mod(hh, 2) == 1) & m_up
    mh = [(h_idx + d >= 0) & (h_idx + d < H) for d in (-1, 0, 1)]
    mw = [(w_idx + d >= 0) & (w_idx + d < W) for d in (-1, 0, 1)]
    masks = jnp.asarray(np.stack([m_x2, m_up, m_odd] + mh + mw).astype(np.float32))

    # ---- weights reshaped for (Co, Ci) @ (Ci, M) matmuls ----
    aup = jnp.transpose(p["up_w"][:, :, :, 0], (2, 1, 0))              # (2,Cin,Cin)
    bup = p["up_b"].reshape(Cin, 1)
    w1t = jnp.transpose(p["conv1_w"], (2, 3, 0, 1)).reshape(9, Cout, Cmid)
    w2t = jnp.transpose(p["conv2_w"], (2, 3, 0, 1)).reshape(9, Cout, Cout)
    g1, b1 = p["bn1_g"].reshape(Cout, 1), p["bn1_b"].reshape(Cout, 1)
    g2, b2 = p["bn2_g"].reshape(Cout, 1), p["bn2_b"].reshape(Cout, 1)
    wsc = p["sc_w"][:, :, 0, 0]                                        # (Cout,Cmid)
    bsc = p["sc_b"].reshape(Cout, 1)

    out_flat = pl.pallas_call(
        functools.partial(_fused_up_kernel, W=W, M=M, roll_np_like=roll_np_like),
        out_shape=jax.ShapeDtypeStruct((Cout, M), jnp.float32),
        grid=(1,),
        in_specs=[
            pl.BlockSpec((Cin, M), lambda i: (0, 0)),            # xsrc
            pl.BlockSpec((9, M), lambda i: (0, 0)),              # masks
            pl.BlockSpec((2, Cin, Cin), lambda i: (0, 0, 0)),    # aup
            pl.BlockSpec((Cin, 1), lambda i: (0, 0)),            # bup
            pl.BlockSpec((9, Cout, Cmid), lambda i: (0, 0, 0)),  # w1
            pl.BlockSpec((Cout, 1), lambda i: (0, 0)),           # g1
            pl.BlockSpec((Cout, 1), lambda i: (0, 0)),           # b1
            pl.BlockSpec((9, Cout, Cout), lambda i: (0, 0, 0)),  # w2
            pl.BlockSpec((Cout, 1), lambda i: (0, 0)),           # g2
            pl.BlockSpec((Cout, 1), lambda i: (0, 0)),           # b2
            pl.BlockSpec((Cout, Cmid), lambda i: (0, 0)),        # wsc
            pl.BlockSpec((Cout, 1), lambda i: (0, 0)),           # bsc
        ],
        out_specs=pl.BlockSpec((Cout, M), lambda i: (0, 0)),
        compiler_params=pltpu.CompilerParams(
            dimension_semantics=("arbitrary",)),
    )(xsrc, masks, aup, bup, w1t, g1, b1, w2t, g2, b2, wsc, bsc)

    # (Cout, M) -> NCHW
    return jnp.transpose(out_flat.reshape(Cout, N, H, W), (1, 0, 2, 3))


# ------------------------------ params / main -------------------------------

def init_params(key, cin, cmid, cout):
    ks = jax.random.split(key, 10)

    def nrm(k, shape, s=0.1):
        return (s * jax.random.normal(k, shape)).astype(jnp.float32)

    return dict(
        up_w=nrm(ks[0], (cin, cin, 2, 1)),     # ConvTranspose2d weight
        up_b=nrm(ks[1], (cin,)),               # ConvTranspose2d bias
        conv1_w=nrm(ks[2], (cout, cmid, 3, 3)),
        bn1_g=(1.0 + nrm(ks[3], (cout,))).astype(jnp.float32),
        bn1_b=nrm(ks[4], (cout,)),
        conv2_w=nrm(ks[5], (cout, cout, 3, 3)),
        bn2_g=(1.0 + nrm(ks[6], (cout,))).astype(jnp.float32),
        bn2_b=nrm(ks[7], (cout,)),
        sc_w=nrm(ks[8], (cout, cmid, 1, 1)),   # 1x1 shortcut conv
        sc_b=nrm(ks[9], (cout,)),
    )


if __name__ == "__main__":
    key = jax.random.PRNGKey(0)
    k1, k2, kp = jax.random.split(key, 3)

    # Up(in_channels=4, mid_channels=4, out_channels=8); concat along H
    # requires x1/x2 to share the channel count (= in_channels = mid_channels).
    IN_C, MID_C, OUT_C = 4, 4, 8
    x1 = jax.random.normal(k1, (2, IN_C, 8, 16), jnp.float32)    # NCHW
    x2 = jax.random.normal(k2, (2, IN_C, 16, 16), jnp.float32)   # NCHW
    params = init_params(kp, IN_C, MID_C, OUT_C)

    roll_up = _roll_moves_elements_up()
    fwd = jax.jit(functools.partial(up_forward, roll_np_like=roll_up))
    out = jax.block_until_ready(fwd(x1, x2, params))

    assert out.shape == (2, OUT_C, 32, 16), out.shape
    assert bool(jnp.all(jnp.isfinite(out)))
    print("KERNEL_OK")
</pallas_src>

<mosaic_0001>
module attributes {stable_mosaic.version = 11 : i64} {
  func.func @kernel(%arg0: i32, %arg1: memref<8x128xf32, #tpu.memory_space<vmem>>, %arg2: memref<8x128xf32, #tpu.memory_space<vmem>>) attributes {dimension_semantics = [#tpu.dimension_semantics<arbitrary>], iteration_bounds = array<i64: 1>, scalar_prefetch = 0 : i64, scratch_operands = 0 : i64, tpu.core_type = #tpu.core_type<tc>, window_params = [{pipeline_mode = #tpu.pipeline_mode<synchronous>, transform_indices = @transform_0, window_bounds = array<i64: 8, 128>}, {pipeline_mode = #tpu.pipeline_mode<synchronous>, transform_indices = @transform_1, window_bounds = array<i64: 8, 128>}]} {
    %c0 = arith.constant 0 : index
    %c0_0 = arith.constant 0 : index
    %0 = vector.load %arg1[%c0, %c0_0] : memref<8x128xf32, #tpu.memory_space<vmem>>, vector<8x128xf32>
    %c3_i32 = arith.constant 3 : i32
    %1 = tpu.dynamic_rotate %0 by %c3_i32 dim 1 : vector<8x128xf32>, i32 -> vector<8x128xf32>
    %c0_1 = arith.constant 0 : index
    %c0_2 = arith.constant 0 : index
    %2 = vector.load %arg2[%c0_1, %c0_2] : memref<8x128xf32, #tpu.memory_space<vmem>>, vector<8x128xf32>
    tpu.vector_store %arg2[%c0_1, %c0_2], %1 {strides = array<i32>} : memref<8x128xf32, #tpu.memory_space<vmem>>, vector<8x128xf32>,
    return
  }
  func.func @transform_0(%arg0: i32) -> (i32, i32) {
    %c0_i32 = arith.constant 0 : i32
    %c0_i32_0 = arith.constant 0 : i32
    %c0_i32_1 = arith.constant 0 : i32
    return %c0_i32, %c0_i32_0 : i32, i32
  }
  func.func @transform_1(%arg0: i32) -> (i32, i32) {
    %c0_i32 = arith.constant 0 : i32
    %c0_i32_0 = arith.constant 0 : i32
    %c0_i32_1 = arith.constant 0 : i32
    return %c0_i32, %c0_i32_0 : i32, i32
  }
}

</mosaic_0001>

<llo_original>
// kernel: tpu_custom_call.1
$region0: #{tpu_custom_call.1}
  #allocation0 [shape = 'u32[]', space=smem, size = 0x4, offset = 0x4, fixed_abs, tag = 'smem constant byte address 0x4 - core index']
  #allocation1 [shape = 'u32[144,128]{1,0:T(1,128)}', space=vmem, size = 0x12000, scoped, tag = 'internal scratch']
  %s0 = inlined_call_operand.hbm [shape: f32[8,128], index: 0, kind: input, shape index: {}]
  %s1 = inlined_call_operand.hbm [shape: f32[8,128], index: 1, kind: output, shape index: {}]
  %s2 = sld [smem:[#allocation0]]
  $region18: #{tpu_custom_call.1} parent=0
    _
  %s4 = ssub.s32 1, %s2
  %s5 = scalar_select 0, %s4, %s2
  $region1: #{tpu_custom_call.1} parent=0
    #allocation2 [shape = 'u8[4096]{0}', space=vmem, size = 0x1000, scoped, tag = 'input window, operand 0, single buffered']
    #allocation3 [shape = 's32[1]{0}', space=sflag, size = 0x4, scoped, tag = 'scoped memory for tpu_custom_call.1']
    #allocation4 [shape = 's32[1]{0}', space=sflag, size = 0x4, scoped, tag = 'scoped memory for tpu_custom_call.1']
    #allocation5 [shape = 'u8[4096]{0}', space=vmem, size = 0x1000, scoped, tag = 'output window, operand 0, single buffered']
    %6 = vsyncpa [#allocation3], 0
    %7 = vsyncpa [#allocation4], 0
    // Predicated region
    $region2: #{tpu_custom_call.1} parent=1 // pred_check
      _
    $region3: #{tpu_custom_call.1} parent=1 // pred_check_branch
      %9 = sbr.rel (0) target = $region5
    $region4: #{tpu_custom_call.1} parent=1 // pred_region
      %s11 = ssub.s32 128, 128
      %12 = vsyncadd [#allocation3], %s11
      %s14 = sshll.u32 [#allocation2], 4
      %s15 = int_to_ptr.vmem [resolvable:$true] %s14
      %17 = dma.hbm_to_vmem [thread:$0]  %s0, 128, %s15, [#allocation3]
    $region5: #{tpu_custom_call.1} parent=1 // pred_fallthru
      _
    // Predicated region
    $region6: #{tpu_custom_call.1} parent=1 // pred_check
      _
    $region7: #{tpu_custom_call.1} parent=1 // pred_check_branch
      %19 = sbr.rel (0) target = $region9
    $region8: #{tpu_custom_call.1} parent=1 // pred_region
      %20 = dma.done [#allocation3], 128
    $region9: #{tpu_custom_call.1} parent=1 // pred_fallthru
      _
    %v21 = vld [vmem:[#allocation2] sm:$0xff]
    %22 = vrot.lane.b32.xlu0 %v21, 3
    %v23 = vpop.permute.xlu0 %22
    %24 = vst [vmem:[#allocation5] sm:$0xff] %v23
    // Predicated region
    $region10: #{tpu_custom_call.1} parent=1 // pred_check
      _
    $region11: #{tpu_custom_call.1} parent=1 // pred_check_branch
      %26 = sbr.rel (0) target = $region13
    $region12: #{tpu_custom_call.1} parent=1 // pred_region
      %s28 = ssub.s32 128, 128
      %29 = vsyncadd [#allocation4], %s28
      %s31 = sshll.u32 [#allocation5], 4
      %s32 = int_to_ptr.vmem [resolvable:$true] %s31
      %34 = dma.vmem_to_hbm [thread:$0]  %s32, 128, %s1, [#allocation4]
    $region13: #{tpu_custom_call.1} parent=1 // pred_fallthru
      _
    // Predicated region
    $region14: #{tpu_custom_call.1} parent=1 // pred_check
      _
    $region15: #{tpu_custom_call.1} parent=1 // pred_check_branch
      %36 = sbr.rel (0) target = $region17
    $region16: #{tpu_custom_call.1} parent=1 // pred_region
      %37 = dma.done [#allocation4], 128
    $region17: #{tpu_custom_call.1} parent=1 // pred_fallthru
      _
    %38 = vsyncpa [#allocation3], 1
    %39 = vsyncpa [#allocation4], 1

</llo_original>
